<compile_context>
chip_gen: v7x
topology: tpu7x:2x2x1
jax: 0.10.0
libtpu: 0.0.40
codegen_flags: <defaults>
</compile_context>

<pallas_src>
import jax
import jax.numpy as jnp
from jax.experimental import pallas as pl
from jax.experimental.pallas import tpu as pltpu

LANE = 128      # lane width (last-dim vreg width)
SUBLANE = 8     # sublane granularity (second-last dim)


def _round_up(x, m):
    return (x + m - 1) // m * m


# ----------------------------- parameter init ------------------------------

def orthogonal_init(key, out_dim, in_dim, gain):
    """Mimic torch.nn.init.orthogonal_ on a (out_dim, in_dim) weight."""
    rows, cols = out_dim, in_dim
    flat = jax.random.normal(key, (rows, cols), dtype=jnp.float32)
    if rows < cols:
        flat = flat.T
    q, r = jnp.linalg.qr(flat)
    d = jnp.sign(jnp.diagonal(r))
    d = jnp.where(d == 0, 1.0, d)        # avoid zeroing a column on sign(0)
    q = q * d[None, :]
    if rows < cols:
        q = q.T
    return gain * q  # (out_dim, in_dim)


def build_params(key, obs_dim, act_dim, hidden_sizes):
    """Return list of (W_[in,out], b_[1,out]) (UNPADDED, torch-equivalent)."""
    dims = [obs_dim] + list(hidden_sizes) + [act_dim]
    n_layers = len(dims) - 1
    params = []
    keys = jax.random.split(key, n_layers)
    for i in range(n_layers):
        gain = 0.01 if i == n_layers - 1 else 1.0
        w_torch = orthogonal_init(keys[i], dims[i + 1], dims[i], gain)  # (out, in)
        w = jnp.asarray(w_torch.T, dtype=jnp.float32)                   # (in, out)
        b = jnp.zeros((1, dims[i + 1]), dtype=jnp.float32)
        params.append((w, b))
    return params


# ------------------------------ Pallas kernel -------------------------------

def _make_kernel(n_layers, action_max, mm_dtype):
    def kernel(*refs):
        obs_ref = refs[0]
        param_refs = refs[1:1 + 2 * n_layers]
        u_ref = refs[1 + 2 * n_layers]
        a_ref = refs[2 + 2 * n_layers]

        x = obs_ref[...]                                   # (TB, obs_dim) f32
        for i in range(n_layers):
            w = param_refs[2 * i][...]                     # (in_p, out_p) mm_dtype
            b = param_refs[2 * i + 1][...]                 # (1, out_p)    f32
            x = jnp.dot(x.astype(mm_dtype), w,
                        preferred_element_type=jnp.float32) + b
            if i < n_layers - 1:                           # hidden act: ReLU (VPU, f32)
                x = jnp.maximum(x, 0.0)
        # Narrow outputs: act_dim columns only (masked stores are far cheaper
        # than writing a 128-lane padded slab to HBM).
        u_ref[...] = x.astype(u_ref.dtype)
        a_ref[...] = (jnp.tanh(x) * action_max).astype(a_ref.dtype)
    return kernel


def mlp_actor_td3_forward(obs, params, action_max, *, tb=2048,
                          matmul_dtype=jnp.float32):
    """Fused MLP actor forward. Returns (a, u), each (batch, act_dim)."""
    n_layers = len(params)
    batch, obs_dim = obs.shape
    act_dim = params[-1][0].shape[1]
    obs = obs.astype(jnp.float32)

    # ---- lane-pad HIDDEN widths to 128; final layer stays act_dim wide ------
    padded_params = []
    in_dim_p = obs_dim
    for li, (w, b) in enumerate(params):
        in_dim, out_dim = w.shape
        out_dim_p = out_dim if li == n_layers - 1 else _round_up(out_dim, LANE)
        w_p = jnp.zeros((in_dim_p, out_dim_p), jnp.float32)
        w_p = w_p.at[:in_dim, :out_dim].set(w)
        b_p = jnp.zeros((1, out_dim_p), jnp.float32).at[:, :out_dim].set(b)
        padded_params.append((w_p.astype(matmul_dtype), b_p))   # bias stays f32
        in_dim_p = out_dim_p

    # ---- batch tiling: TB rows/step; ragged tail handled by partial block ---
    if batch > tb:
        tb_eff = _round_up(tb, SUBLANE)
    elif batch > tb // 2:
        # split into two blocks so the "parallel" axis uses both v7x TCs
        tb_eff = _round_up(pl.cdiv(batch, 2), SUBLANE)
    else:
        tb_eff = max(_round_up(batch, SUBLANE), SUBLANE)
    n_blocks = pl.cdiv(batch, tb_eff)

    flat_params = []
    for w_p, b_p in padded_params:
        flat_params.extend([w_p, b_p])

    # ---- specs: stream obs/outputs over the grid, keep weights resident -----
    obs_spec = pl.BlockSpec((tb_eff, obs_dim), lambda i: (i, 0))
    param_specs = []
    for w_p, b_p in padded_params:
        param_specs.append(pl.BlockSpec(w_p.shape, lambda i: (0, 0)))
        param_specs.append(pl.BlockSpec(b_p.shape, lambda i: (0, 0)))
    out_specs = [pl.BlockSpec((tb_eff, act_dim), lambda i: (i, 0)),
                 pl.BlockSpec((tb_eff, act_dim), lambda i: (i, 0))]

    # ---- explicit VMEM budget (generation-aware cap, never above physical) --
    stream_bytes = 2 * tb_eff * obs_dim * 4 + 2 * 2 * tb_eff * act_dim * 4
    weight_bytes = 2 * sum(int(w.size) * w.dtype.itemsize + int(b.size) * 4
                           for w, b in padded_params)
    max_width = max(w.shape[1] for w, _ in padded_params)
    act_bytes = 4 * tb_eff * max_width * 4          # intermediate activation headroom
    vmem_needed = stream_bytes + weight_bytes + act_bytes
    try:
        vmem_cap = int(pltpu.get_tpu_info().vmem_capacity_bytes)
    except Exception:
        vmem_cap = 64 << 20                          # conservative (v7x per-TC)
    cap = min((vmem_cap * 3) // 4, 96 << 20)         # <= 48 MiB on v7x
    vmem_limit = int(min(max(2 * vmem_needed, 8 << 20), cap))

    # ---- advisory cost estimate for the XLA scheduler ------------------------
    flops = 2 * batch * sum(int(w.shape[0]) * int(w.shape[1]) for w, _ in padded_params)
    bytes_accessed = (batch * obs_dim * 4
                      + sum(int(w.size) * w.dtype.itemsize + int(b.size) * 4
                            for w, b in padded_params)
                      + 2 * batch * act_dim * 4)
    cost = pl.CostEstimate(flops=flops, transcendentals=batch * act_dim,
                           bytes_accessed=bytes_accessed)

    kernel = _make_kernel(n_layers, float(action_max), matmul_dtype)

    u, a = pl.pallas_call(
        kernel,
        out_shape=(jax.ShapeDtypeStruct((batch, act_dim), jnp.float32),
                   jax.ShapeDtypeStruct((batch, act_dim), jnp.float32)),
        grid=(n_blocks,),
        in_specs=[obs_spec] + param_specs,
        out_specs=out_specs,
        compiler_params=pltpu.CompilerParams(
            dimension_semantics=("parallel",),   # 2-TC shard on v7x
            vmem_limit_bytes=vmem_limit,
        ),
        cost_estimate=cost,
    )(obs, *flat_params)

    return a, u


def mlp_actor_td3_forward_target(obs, target_params, action_max, *, tb=2048,
                                 matmul_dtype=jnp.float32):
    """forward_target: same kernel over the (frozen) target parameters."""
    a, _ = mlp_actor_td3_forward(obs, target_params, action_max, tb=tb,
                                 matmul_dtype=matmul_dtype)
    return a


def _reference_forward(obs, params, action_max):
    x = obs
    for i, (w, b) in enumerate(params):
        x = x @ w + b
        if i < len(params) - 1:
            x = jnp.maximum(x, 0.0)
    return jnp.tanh(x) * action_max, x


# ----------------------------------- main -----------------------------------

if __name__ == "__main__":
    # Small shapes consistent with the module.
    obs_dim = 16
    act_dim = 4
    hidden_sizes = [32, 32]
    action_max = 2.0
    batch = 8

    key = jax.random.PRNGKey(0)
    k_obs, k_par, k_obs2 = jax.random.split(key, 3)

    obs = jax.random.normal(k_obs, (batch, obs_dim), dtype=jnp.float32)
    params = build_params(k_par, obs_dim, act_dim, hidden_sizes)

    # --- f32 matmul path (exact) ---------------------------------------------
    a, u = mlp_actor_td3_forward(obs, params, action_max)
    jax.block_until_ready((a, u))
    a_ref, u_ref = _reference_forward(obs, params, action_max)
    assert u.shape == (batch, act_dim) and a.shape == (batch, act_dim)
    assert jnp.allclose(u, u_ref, atol=1e-5), "u mismatch (f32)"
    assert jnp.allclose(a, a_ref, atol=1e-5), "a mismatch (f32)"

    # --- ragged batch (partial last block, no wrapper pad) --------------------
    batch2 = 20
    obs2 = jax.random.normal(k_obs2, (batch2, obs_dim), dtype=jnp.float32)
    a2, u2 = mlp_actor_td3_forward(obs2, params, action_max)
    jax.block_until_ready((a2, u2))
    a2_ref, u2_ref = _reference_forward(obs2, params, action_max)
    assert jnp.allclose(u2, u2_ref, atol=1e-5), "u mismatch (ragged)"
    assert jnp.allclose(a2, a2_ref, atol=1e-5), "a mismatch (ragged)"

    # --- bf16 MXU inputs, f32 accumulation / epilogue -------------------------
    a_bf, u_bf = mlp_actor_td3_forward(obs, params, action_max,
                                       matmul_dtype=jnp.bfloat16)
    jax.block_until_ready((a_bf, u_bf))
    assert jnp.allclose(u_bf, u_ref, atol=2e-2), "u mismatch (bf16)"
    assert jnp.allclose(a_bf, a_ref, atol=2e-2), "a mismatch (bf16)"

    # net_target is a frozen deepcopy of net; forward_target reuses the same
    # kernel with an identical parameter list (no gradients in this context).
    a_t = mlp_actor_td3_forward_target(obs, params, action_max)
    jax.block_until_ready(a_t)
    assert jnp.allclose(a_t, a_ref, atol=1e-5), "target mismatch"

    print("KERNEL_OK")
</pallas_src>

<mosaic_0001>
module attributes {stable_mosaic.version = 11 : i64} {
  func.func @kernel(%arg0: i32, %arg1: memref<8x16xf32, #tpu.memory_space<vmem>>, %arg2: memref<16x128xf32, #tpu.memory_space<vmem>>, %arg3: memref<1x128xf32, #tpu.memory_space<vmem>>, %arg4: memref<128x128xf32, #tpu.memory_space<vmem>>, %arg5: memref<1x128xf32, #tpu.memory_space<vmem>>, %arg6: memref<128x4xf32, #tpu.memory_space<vmem>>, %arg7: memref<1x4xf32, #tpu.memory_space<vmem>>, %arg8: memref<8x4xf32, #tpu.memory_space<vmem>>, %arg9: memref<8x4xf32, #tpu.memory_space<vmem>>) attributes {dimension_semantics = [#tpu.dimension_semantics<parallel>], iteration_bounds = array<i64: 1>, scalar_prefetch = 0 : i64, scratch_operands = 0 : i64, tpu.core_type = #tpu.core_type<tc>, window_params = [{transform_indices = @transform_0, window_bounds = array<i64: 8, 16>}, {pipeline_mode = #tpu.pipeline_mode<synchronous>, transform_indices = @transform_1, window_bounds = array<i64: 16, 128>}, {pipeline_mode = #tpu.pipeline_mode<synchronous>, transform_indices = @transform_2, window_bounds = array<i64: 1, 128>}, {pipeline_mode = #tpu.pipeline_mode<synchronous>, transform_indices = @transform_3, window_bounds = array<i64: 128, 128>}, {pipeline_mode = #tpu.pipeline_mode<synchronous>, transform_indices = @transform_4, window_bounds = array<i64: 1, 128>}, {pipeline_mode = #tpu.pipeline_mode<synchronous>, transform_indices = @transform_5, window_bounds = array<i64: 128, 4>}, {pipeline_mode = #tpu.pipeline_mode<synchronous>, transform_indices = @transform_6, window_bounds = array<i64: 1, 4>}, {transform_indices = @transform_7, window_bounds = array<i64: 8, 4>}, {transform_indices = @transform_8, window_bounds = array<i64: 8, 4>}]} {
    %c0 = arith.constant 0 : index
    %c0_0 = arith.constant 0 : index
    %0 = vector.load %arg1[%c0, %c0_0] : memref<8x16xf32, #tpu.memory_space<vmem>>, vector<8x16xf32>
    %c0_1 = arith.constant 0 : index
    %c0_2 = arith.constant 0 : index
    %1 = vector.load %arg2[%c0_1, %c0_2] : memref<16x128xf32, #tpu.memory_space<vmem>>, vector<16x128xf32>
    %c0_3 = arith.constant 0 : index
    %c0_4 = arith.constant 0 : index
    %2 = vector.load %arg3[%c0_3, %c0_4] : memref<1x128xf32, #tpu.memory_space<vmem>>, vector<1x128xf32>
    %cst = arith.constant dense<0.000000e+00> : vector<8x128xf32>
    %3 = tpu.matmul %0, %1, %cst {dimension_numbers = #tpu.dot_dimension_numbers<[1], [0], [0], [1], [0, 0, 1, 1], [], []>} : vector<8x16xf32>, vector<16x128xf32>, vector<8x128xf32> -> vector<8x128xf32>
    %4 = vector.broadcast %2 : vector<1x128xf32> to vector<8x128xf32>
    %5 = arith.addf %3, %4 : vector<8x128xf32>
    %cst_5 = arith.constant 0.000000e+00 : f32
    %6 = vector.broadcast %cst_5 : f32 to vector<8x128xf32>
    %7 = arith.maximumf %5, %6 : vector<8x128xf32>
    %c0_6 = arith.constant 0 : index
    %c0_7 = arith.constant 0 : index
    %8 = vector.load %arg4[%c0_6, %c0_7] : memref<128x128xf32, #tpu.memory_space<vmem>>, vector<128x128xf32>
    %c0_8 = arith.constant 0 : index
    %c0_9 = arith.constant 0 : index
    %9 = vector.load %arg5[%c0_8, %c0_9] : memref<1x128xf32, #tpu.memory_space<vmem>>, vector<1x128xf32>
    %cst_10 = arith.constant dense<0.000000e+00> : vector<8x128xf32>
    %10 = tpu.matmul %7, %8, %cst_10 {dimension_numbers = #tpu.dot_dimension_numbers<[1], [0], [0], [1], [0, 0, 1, 1], [], []>} : vector<8x128xf32>, vector<128x128xf32>, vector<8x128xf32> -> vector<8x128xf32>
    %11 = vector.broadcast %9 : vector<1x128xf32> to vector<8x128xf32>
    %12 = arith.addf %10, %11 : vector<8x128xf32>
    %cst_11 = arith.constant 0.000000e+00 : f32
    %13 = vector.broadcast %cst_11 : f32 to vector<8x128xf32>
    %14 = arith.maximumf %12, %13 : vector<8x128xf32>
    %c0_12 = arith.constant 0 : index
    %c0_13 = arith.constant 0 : index
    %15 = vector.load %arg6[%c0_12, %c0_13] : memref<128x4xf32, #tpu.memory_space<vmem>>, vector<128x4xf32>
    %c0_14 = arith.constant 0 : index
    %c0_15 = arith.constant 0 : index
    %16 = vector.load %arg7[%c0_14, %c0_15] : memref<1x4xf32, #tpu.memory_space<vmem>>, vector<1x4xf32>
    %cst_16 = arith.constant dense<0.000000e+00> : vector<8x4xf32>
    %17 = tpu.matmul %14, %15, %cst_16 {dimension_numbers = #tpu.dot_dimension_numbers<[1], [0], [0], [1], [0, 0, 1, 1], [], []>} : vector<8x128xf32>, vector<128x4xf32>, vector<8x4xf32> -> vector<8x4xf32>
    %18 = vector.broadcast %16 : vector<1x4xf32> to vector<8x4xf32>
    %19 = arith.addf %17, %18 : vector<8x4xf32>
    %c0_17 = arith.constant 0 : index
    %c0_18 = arith.constant 0 : index
    %20 = vector.load %arg8[%c0_17, %c0_18] : memref<8x4xf32, #tpu.memory_space<vmem>>, vector<8x4xf32>
    tpu.vector_store %arg8[%c0_17, %c0_18], %19 {strides = array<i32>} : memref<8x4xf32, #tpu.memory_space<vmem>>, vector<8x4xf32>,
    %21 = math.tanh %19 : vector<8x4xf32>
    %cst_19 = arith.constant 2.000000e+00 : f32
    %22 = vector.broadcast %cst_19 : f32 to vector<8x4xf32>
    %23 = arith.mulf %21, %22 : vector<8x4xf32>
    %c0_20 = arith.constant 0 : index
    %c0_21 = arith.constant 0 : index
    %24 = vector.load %arg9[%c0_20, %c0_21] : memref<8x4xf32, #tpu.memory_space<vmem>>, vector<8x4xf32>
    tpu.vector_store %arg9[%c0_20, %c0_21], %23 {strides = array<i32>} : memref<8x4xf32, #tpu.memory_space<vmem>>, vector<8x4xf32>,
    return
  }
  func.func @transform_0(%arg0: i32) -> (i32, i32) {
    %c0_i32 = arith.constant 0 : i32
    %c0_i32_0 = arith.constant 0 : i32
    return %arg0, %c0_i32 : i32, i32
  }
  func.func @transform_1(%arg0: i32) -> (i32, i32) {
    %c0_i32 = arith.constant 0 : i32
    %c0_i32_0 = arith.constant 0 : i32
    %c0_i32_1 = arith.constant 0 : i32
    return %c0_i32, %c0_i32_0 : i32, i32
  }
  func.func @transform_2(%arg0: i32) -> (i32, i32) {
    %c0_i32 = arith.constant 0 : i32
    %c0_i32_0 = arith.constant 0 : i32
    %c0_i32_1 = arith.constant 0 : i32
    return %c0_i32, %c0_i32_0 : i32, i32
  }
  func.func @transform_3(%arg0: i32) -> (i32, i32) {
    %c0_i32 = arith.constant 0 : i32
    %c0_i32_0 = arith.constant 0 : i32
    %c0_i32_1 = arith.constant 0 : i32
    return %c0_i32, %c0_i32_0 : i32, i32
  }
  func.func @transform_4(%arg0: i32) -> (i32, i32) {
    %c0_i32 = arith.constant 0 : i32
    %c0_i32_0 = arith.constant 0 : i32
    %c0_i32_1 = arith.constant 0 : i32
    return %c0_i32, %c0_i32_0 : i32, i32
  }
  func.func @transform_5(%arg0: i32) -> (i32, i32) {
    %c0_i32 = arith.constant 0 : i32
    %c0_i32_0 = arith.constant 0 : i32
    %c0_i32_1 = arith.constant 0 : i32
    return %c0_i32, %c0_i32_0 : i32, i32
  }
  func.func @transform_6(%arg0: i32) -> (i32, i32) {
    %c0_i32 = arith.constant 0 : i32
    %c0_i32_0 = arith.constant 0 : i32
    %c0_i32_1 = arith.constant 0 : i32
    return %c0_i32, %c0_i32_0 : i32, i32
  }
  func.func @transform_7(%arg0: i32) -> (i32, i32) {
    %c0_i32 = arith.constant 0 : i32
    %c0_i32_0 = arith.constant 0 : i32
    return %arg0, %c0_i32 : i32, i32
  }
  func.func @transform_8(%arg0: i32) -> (i32, i32) {
    %c0_i32 = arith.constant 0 : i32
    %c0_i32_0 = arith.constant 0 : i32
    return %arg0, %c0_i32 : i32, i32
  }
}

</mosaic_0001>

<llo_original>
// kernel: tpu_custom_call.1
$region0: #{tpu_custom_call.1}
  #allocation0 [shape = 'u32[]', space=smem, size = 0x4, offset = 0x4, fixed_abs, tag = 'smem constant byte address 0x4 - core index']
  #allocation1 [shape = 'u32[144,128]{1,0:T(1,128)}', space=vmem, size = 0x12000, scoped, tag = 'internal scratch']
  %s0 = inlined_call_operand.vmem [shape: f32[8,16], index: 0, kind: input, shape index: {}]
  %s1 = inlined_call_operand.hbm [shape: f32[16,128], index: 1, kind: input, shape index: {}]
  %s2 = inlined_call_operand.vmem [shape: f32[1,128], index: 2, kind: input, shape index: {}]
  %s3 = inlined_call_operand.vmem [shape: f32[128,128], index: 3, kind: input, shape index: {}]
  %s4 = inlined_call_operand.vmem [shape: f32[1,128], index: 4, kind: input, shape index: {}]
  %s5 = inlined_call_operand.vmem [shape: f32[128,4], index: 5, kind: input, shape index: {}]
  %s6 = inlined_call_operand.vmem [shape: f32[1,4], index: 6, kind: input, shape index: {}]
  %s7 = inlined_call_operand.vmem [shape: f32[8,4], index: 7, kind: output, shape index: {0}]
  %s8 = inlined_call_operand.vmem [shape: f32[8,4], index: 8, kind: output, shape index: {1}]
  %9 = xla_tuple %s7, %s8
  %s10 = sld [smem:[#allocation0]]
  $region50: #{tpu_custom_call.1} parent=0
    _
  %s12 = ssub.s32 1, %s10
  %s13 = scalar_select 0, %s12, %s10
  $region1: #{tpu_custom_call.1} parent=0
    #allocation2 [shape = 'u8[8192]{0}', space=vmem, size = 0x2000, scoped, tag = 'input window, operand 1, single buffered']
    #allocation3 [shape = 's32[1]{0}', space=sflag, size = 0x4, scoped, tag = 'scoped memory for tpu_custom_call.1']
    %14 = vsyncpa [#allocation3], 0
    // Predicated region
    $region2: #{tpu_custom_call.1} parent=1 // pred_check
      _
    $region3: #{tpu_custom_call.1} parent=1 // pred_check_branch
      %16 = sbr.rel (0) target = $region5
    $region4: #{tpu_custom_call.1} parent=1 // pred_region
      _
    $region5: #{tpu_custom_call.1} parent=1 // pred_fallthru
      _
    // Predicated region
    $region6: #{tpu_custom_call.1} parent=1 // pred_check
      _
    $region7: #{tpu_custom_call.1} parent=1 // pred_check_branch
      %18 = sbr.rel (0) target = $region9
    $region8: #{tpu_custom_call.1} parent=1 // pred_region
      %s20 = ssub.s32 256, 256
      %21 = vsyncadd [#allocation3], %s20
      %s22 = sshll.u32 [#allocation2], 4
      %s23 = int_to_ptr.vmem [resolvable:$true] %s22
      %28 = dma.hbm_to_vmem [thread:$0]  %s1, 256, %s23, [#allocation3], 128, 128, 8
    $region9: #{tpu_custom_call.1} parent=1 // pred_fallthru
      _
    // Predicated region
    $region10: #{tpu_custom_call.1} parent=1 // pred_check
      _
    $region11: #{tpu_custom_call.1} parent=1 // pred_check_branch
      %30 = sbr.rel (0) target = $region13
    $region12: #{tpu_custom_call.1} parent=1 // pred_region
      _
    $region13: #{tpu_custom_call.1} parent=1 // pred_fallthru
      _
    // Predicated region
    $region14: #{tpu_custom_call.1} parent=1 // pred_check
      _
    $region15: #{tpu_custom_call.1} parent=1 // pred_check_branch
      %32 = sbr.rel (0) target = $region17
    $region16: #{tpu_custom_call.1} parent=1 // pred_region
      _
    $region17: #{tpu_custom_call.1} parent=1 // pred_fallthru
      _
    // Predicated region
    $region18: #{tpu_custom_call.1} parent=1 // pred_check
      _
    $region19: #{tpu_custom_call.1} parent=1 // pred_check_branch
      %34 = sbr.rel (0) target = $region21
    $region20: #{tpu_custom_call.1} parent=1 // pred_region
      _
    $region21: #{tpu_custom_call.1} parent=1 // pred_fallthru
      _
    // Predicated region
    $region22: #{tpu_custom_call.1} parent=1 // pred_check
      _
    $region23: #{tpu_custom_call.1} parent=1 // pred_check_branch
      %36 = sbr.rel (0) target = $region25
    $region24: #{tpu_custom_call.1} parent=1 // pred_region
      _
    $region25: #{tpu_custom_call.1} parent=1 // pred_fallthru
      _
    // Predicated region
    $region26: #{tpu_custom_call.1} parent=1 // pred_check
      _
    $region27: #{tpu_custom_call.1} parent=1 // pred_check_branch
      %38 = sbr.rel (0) target = $region29
    $region28: #{tpu_custom_call.1} parent=1 // pred_region
      _
    $region29: #{tpu_custom_call.1} parent=1 // pred_fallthru
      _
    // Predicated region
    $region30: #{tpu_custom_call.1} parent=1 // pred_check
      _
    $region31: #{tpu_custom_call.1} parent=1 // pred_check_branch
      %40 = sbr.rel (0) target = $region33
    $region32: #{tpu_custom_call.1} parent=1 // pred_region
      %41 = dma.done [#allocation3], 256
    $region33: #{tpu_custom_call.1} parent=1 // pred_fallthru
      _
    %v42 = vld [vmem:[%s0] sm:$0xff]
    %v43 = vld [vmem:[#allocation2] sm:$0xff]
    %v44 = vld [vmem:[#allocation2 + $0x8] sm:$0xff]
    %v45 = vld [vmem:[%s2] sm:$0x1]
    %v47 = vlaneseq
    %v48 = vshrl.u32 %v47, 7
    %v49 = vsub.s32 0, %v48
    %v50 = vrot.slane %v45, %v49
    %vm52 = vcmask 130048
    %v54 = vsel %vm52, %v42, 0
    %56 = vmatprep.subr.mxu0 0.0
    %57 = vmatpush1.msra.mxu0 %v43
    %58 = vmatprep.subr.mxu0 0.0
    %59 = vmatpush1.msra.mxu0 %v44
    %60 = vmatprep.subr.mxu0 0.0
    %61 = vmatpush1.msra.mxu0 0.0
    %62 = vmatprep.subr.mxu0 0.0
    %63 = vmatpush1.msra.mxu0 0.0
    %64 = vmatprep.subr.mxu0 0.0
    %65 = vmatpush1.msra.mxu0 0.0
    %66 = vmatprep.subr.mxu0 0.0
    %67 = vmatpush1.msra.mxu0 0.0
    %68 = vmatprep.subr.mxu0 0.0
    %69 = vmatpush1.msra.mxu0 0.0
    %70 = vmatprep.subr.mxu0 0.0
    %71 = vmatpush1.msra.mxu0 0.0
    %72 = vmatprep.subr.mxu0 0.0
    %73 = vmatpush1.msra.mxu0 0.0
    %74 = vmatprep.subr.mxu0 0.0
    %75 = vmatpush1.msra.mxu0 0.0
    %76 = vmatprep.subr.mxu0 0.0
    %77 = vmatpush1.msra.mxu0 0.0
    %78 = vmatprep.subr.mxu0 0.0
    %79 = vmatpush1.msra.mxu0 0.0
    %80 = vmatprep.subr.mxu0 0.0
    %81 = vmatpush1.msra.mxu0 0.0
    %82 = vmatprep.subr.mxu0 0.0
    %83 = vmatpush1.msra.mxu0 0.0
    %84 = vmatprep.subr.mxu0 0.0
    %85 = vmatpush1.msra.mxu0 0.0
    %86 = vmatprep.subr.mxu0 0.0
    %87 = vmatpush1.msra.mxu0 0.0
    %88 = vmatprep.subr.mxu0 0.0
    %89 = vmatpush1.msra.mxu0 0.0
    %90 = vmatprep.subr.mxu0 0.0
    %91 = vmatpush1.msra.mxu0 0.0
    %92 = vmatprep.subr.mxu0 0.0
    %93 = vmatpush1.msra.mxu0 0.0
    %94 = vmatprep.subr.mxu0 0.0
    %95 = vmatpush1.msra.mxu0 0.0
    %96 = vmatprep.subr.mxu0 0.0
    %97 = vmatpush1.msra.mxu0 0.0
    %98 = vmatprep.subr.mxu0 0.0
    %99 = vmatpush1.msra.mxu0 0.0
    %100 = vmatprep.subr.mxu0 0.0
    %101 = vmatpush1.msra.mxu0 0.0
    %102 = vmatprep.subr.mxu0 0.0
    %103 = vmatpush1.msra.mxu0 0.0
    %104 = vmatprep.subr.mxu0 0.0
    %105 = vmatpush1.msra.mxu0 0.0
    %106 = vmatprep.subr.mxu0 0.0
    %107 = vmatpush1.msra.mxu0 0.0
    %108 = vmatprep.subr.mxu0 0.0
    %109 = vmatpush1.msra.mxu0 0.0
    %110 = vmatprep.subr.mxu0 0.0
    %111 = vmatpush1.msra.mxu0 0.0
    %112 = vmatprep.subr.mxu0 0.0
    %113 = vmatpush1.msra.mxu0 0.0
    %114 = vmatprep.subr.mxu0 0.0
    %115 = vmatpush1.msra.mxu0 0.0
    %116 = vmatprep.subr.mxu0 0.0
    %117 = vmatpush1.msra.mxu0 0.0
    %118 = vmatprep.subr.mxu0 0.0
    %119 = vmatpush1.msra.mxu0 0.0
    %120 = vmatprep.mubr.f32.mxu0 0.0
    %121 = vmatmul.mubr.f32.gmra.mrb[0].mxu0 %v54
    %v122 = vpop.f32.mrb[0].mxu0
    %v123 = vadd.f32 %v50, %v122
    %v124 = vpop.f32.mrb[0].mxu0
    %125 = vdwg.mxu0
    %v126 = vmax.f32 %v123, 0.0
    %v127 = vld [vmem:[%s3] sm:$0xff]
    %v128 = vld [vmem:[%s3 + $0x8] sm:$0xff]
    %v129 = vld [vmem:[%s3 + $0x10] sm:$0xff]
    %v130 = vld [vmem:[%s3 + $0x18] sm:$0xff]
    %v131 = vld [vmem:[%s3 + $0x20] sm:$0xff]
    %v132 = vld [vmem:[%s3 + $0x28] sm:$0xff]
    %v133 = vld [vmem:[%s3 + $0x30] sm:$0xff]
    %v134 = vld [vmem:[%s3 + $0x38] sm:$0xff]
    %v135 = vld [vmem:[%s3 + $0x40] sm:$0xff]
    %v136 = vld [vmem:[%s3 + $0x48] sm:$0xff]
    %v137 = vld [vmem:[%s3 + $0x50] sm:$0xff]
    %v138 = vld [vmem:[%s3 + $0x58] sm:$0xff]
    %v139 = vld [vmem:[%s3 + $0x60] sm:$0xff]
    %v140 = vld [vmem:[%s3 + $0x68] sm:$0xff]
    %v141 = vld [vmem:[%s3 + $0x70] sm:$0xff]
    %v142 = vld [vmem:[%s3 + $0x78] sm:$0xff]
    %v143 = vld [vmem:[%s4] sm:$0x1]
    %v145 = vlaneseq
    %v146 = vshrl.u32 %v145, 7
    %v147 = vsub.s32 0, %v146
    %v148 = vrot.slane %v143, %v147
    %150 = vmatprep.subr.mxu0 0.0
    %151 = vmatpush1.msra.mxu0 %v127
    %152 = vmatprep.subr.mxu0 0.0
    %153 = vmatpush1.msra.mxu0 %v128
    %154 = vmatprep.subr.mxu0 0.0
    %155 = vmatpush1.msra.mxu0 %v129
    %156 = vmatprep.subr.mxu0 0.0
    %157 = vmatpush1.msra.mxu0 %v130
    %158 = vmatprep.subr.mxu0 0.0
    %159 = vmatpush1.msra.mxu0 %v131
    %160 = vmatprep.subr.mxu0 0.0
    %161 = vmatpush1.msra.mxu0 %v132
    %162 = vmatprep.subr.mxu0 0.0
    %163 = vmatpush1.msra.mxu0 %v133
    %164 = vmatprep.subr.mxu0 0.0
    %165 = vmatpush1.msra.mxu0 %v134
    %166 = vmatprep.subr.mxu0 0.0
    %167 = vmatpush1.msra.mxu0 %v135
    %168 = vmatprep.subr.mxu0 0.0
    %169 = vmatpush1.msra.mxu0 %v136
    %170 = vmatprep.subr.mxu0 0.0
    %171 = vmatpush1.msra.mxu0 %v137
    %172 = vmatprep.subr.mxu0 0.0
    %173 = vmatpush1.msra.mxu0 %v138
    %174 = vmatprep.subr.mxu0 0.0
    %175 = vmatpush1.msra.mxu0 %v139
    %176 = vmatprep.subr.mxu0 0.0
    %177 = vmatpush1.msra.mxu0 %v140
    %178 = vmatprep.subr.mxu0 0.0
    %179 = vmatpush1.msra.mxu0 %v141
    %180 = vmatprep.subr.mxu0 0.0
    %181 = vmatpush1.msra.mxu0 %v142
    %182 = vmatprep.subr.mxu0 0.0
    %183 = vmatpush1.msra.mxu0 0.0
    %184 = vmatprep.subr.mxu0 0.0
    %185 = vmatpush1.msra.mxu0 0.0
    %186 = vmatprep.subr.mxu0 0.0
    %187 = vmatpush1.msra.mxu0 0.0
    %188 = vmatprep.subr.mxu0 0.0
    %189 = vmatpush1.msra.mxu0 0.0
    %190 = vmatprep.subr.mxu0 0.0
    %191 = vmatpush1.msra.mxu0 0.0
    %192 = vmatprep.subr.mxu0 0.0
    %193 = vmatpush1.msra.mxu0 0.0
    %194 = vmatprep.subr.mxu0 0.0
    %195 = vmatpush1.msra.mxu0 0.0
    %196 = vmatprep.subr.mxu0 0.0
    %197 = vmatpush1.msra.mxu0 0.0
    %198 = vmatprep.subr.mxu0 0.0
    %199 = vmatpush1.msra.mxu0 0.0
    %200 = vmatprep.subr.mxu0 0.0
    %201 = vmatpush1.msra.mxu0 0.0
    %202 = vmatprep.subr.mxu0 0.0
    %203 = vmatpush1.msra.mxu0 0.0
    %204 = vmatprep.subr.mxu0 0.0
    %205 = vmatpush1.msra.mxu0 0.0
    %206 = vmatprep.subr.mxu0 0.0
    %207 = vmatpush1.msra.mxu0 0.0
    %208 = vmatprep.subr.mxu0 0.0
    %209 = vmatpush1.msra.mxu0 0.0
    %210 = vmatprep.subr.mxu0 0.0
    %211 = vmatpush1.msra.mxu0 0.0
    %212 = vmatprep.subr.mxu0 0.0
    %213 = vmatpush1.msra.mxu0 0.0
    %214 = vmatprep.mubr.f32.mxu0 0.0
    %215 = vmatmul.mubr.f32.gmra.mrb[0].mxu0 %v126
    %v216 = vpop.f32.mrb[0].mxu0
    %v217 = vadd.f32 %v148, %v216
    %v218 = vpop.f32.mrb[0].mxu0
    %219 = vdwg.mxu0
    %v220 = vmax.f32 %v217, 0.0
    %v221 = vld [vmem:[%s5] sm:$0xff]
    %v222 = vld [vmem:[%s5 + $0x8] sm:$0xff]
    %v223 = vld [vmem:[%s5 + $0x10] sm:$0xff]
    %v224 = vld [vmem:[%s5 + $0x18] sm:$0xff]
    %v225 = vld [vmem:[%s5 + $0x20] sm:$0xff]
    %v226 = vld [vmem:[%s5 + $0x28] sm:$0xff]
    %v227 = vld [vmem:[%s5 + $0x30] sm:$0xff]
    %v228 = vld [vmem:[%s5 + $0x38] sm:$0xff]
    %v229 = vld [vmem:[%s5 + $0x40] sm:$0xff]
    %v230 = vld [vmem:[%s5 + $0x48] sm:$0xff]
    %v231 = vld [vmem:[%s5 + $0x50] sm:$0xff]
    %v232 = vld [vmem:[%s5 + $0x58] sm:$0xff]
    %v233 = vld [vmem:[%s5 + $0x60] sm:$0xff]
    %v234 = vld [vmem:[%s5 + $0x68] sm:$0xff]
    %v235 = vld [vmem:[%s5 + $0x70] sm:$0xff]
    %v236 = vld [vmem:[%s5 + $0x78] sm:$0xff]
    %v237 = vld [vmem:[%s6] sm:$0x1]
    %v239 = vlaneseq
    %v240 = vshrl.u32 %v239, 7
    %v241 = vsub.s32 0, %v240
    %v242 = vrot.slane %v237, %v241
    %244 = vmatprep.subr.mxu0 0.0
    %245 = vmatpush1.msra.mxu0 %v221
    %246 = vmatprep.subr.mxu0 0.0
    %247 = vmatpush1.msra.mxu0 %v222
    %248 = vmatprep.subr.mxu0 0.0
    %249 = vmatpush1.msra.mxu0 %v223
    %250 = vmatprep.subr.mxu0 0.0
    %251 = vmatpush1.msra.mxu0 %v224
    %252 = vmatprep.subr.mxu0 0.0
    %253 = vmatpush1.msra.mxu0 %v225
    %254 = vmatprep.subr.mxu0 0.0
    %255 = vmatpush1.msra.mxu0 %v226
    %256 = vmatprep.subr.mxu0 0.0
    %257 = vmatpush1.msra.mxu0 %v227
    %258 = vmatprep.subr.mxu0 0.0
    %259 = vmatpush1.msra.mxu0 %v228
    %260 = vmatprep.subr.mxu0 0.0
    %261 = vmatpush1.msra.mxu0 %v229
    %262 = vmatprep.subr.mxu0 0.0
    %263 = vmatpush1.msra.mxu0 %v230
    %264 = vmatprep.subr.mxu0 0.0
    %265 = vmatpush1.msra.mxu0 %v231
    %266 = vmatprep.subr.mxu0 0.0
    %267 = vmatpush1.msra.mxu0 %v232
    %268 = vmatprep.subr.mxu0 0.0
    %269 = vmatpush1.msra.mxu0 %v233
    %270 = vmatprep.subr.mxu0 0.0
    %271 = vmatpush1.msra.mxu0 %v234
    %272 = vmatprep.subr.mxu0 0.0
    %273 = vmatpush1.msra.mxu0 %v235
    %274 = vmatprep.subr.mxu0 0.0
    %275 = vmatpush1.msra.mxu0 %v236
    %276 = vmatprep.subr.mxu0 0.0
    %277 = vmatpush1.msra.mxu0 0.0
    %278 = vmatprep.subr.mxu0 0.0
    %279 = vmatpush1.msra.mxu0 0.0
    %280 = vmatprep.subr.mxu0 0.0
    %281 = vmatpush1.msra.mxu0 0.0
    %282 = vmatprep.subr.mxu0 0.0
    %283 = vmatpush1.msra.mxu0 0.0
    %284 = vmatprep.subr.mxu0 0.0
    %285 = vmatpush1.msra.mxu0 0.0
    %286 = vmatprep.subr.mxu0 0.0
    %287 = vmatpush1.msra.mxu0 0.0
    %288 = vmatprep.subr.mxu0 0.0
    %289 = vmatpush1.msra.mxu0 0.0
    %290 = vmatprep.subr.mxu0 0.0
    %291 = vmatpush1.msra.mxu0 0.0
    %292 = vmatprep.subr.mxu0 0.0
    %293 = vmatpush1.msra.mxu0 0.0
    %294 = vmatprep.subr.mxu0 0.0
    %295 = vmatpush1.msra.mxu0 0.0
    %296 = vmatprep.subr.mxu0 0.0
    %297 = vmatpush1.msra.mxu0 0.0
    %298 = vmatprep.subr.mxu0 0.0
    %299 = vmatpush1.msra.mxu0 0.0
    %300 = vmatprep.subr.mxu0 0.0
    %301 = vmatpush1.msra.mxu0 0.0
    %302 = vmatprep.subr.mxu0 0.0
    %303 = vmatpush1.msra.mxu0 0.0
    %304 = vmatprep.subr.mxu0 0.0
    %305 = vmatpush1.msra.mxu0 0.0
    %306 = vmatprep.subr.mxu0 0.0
    %307 = vmatpush1.msra.mxu0 0.0
    %308 = vmatprep.mubr.f32.mxu0 0.0
    %309 = vmatmul.mubr.f32.gmra.mrb[0].mxu0 %v220
    %v310 = vpop.f32.mrb[0].mxu0
    %v311 = vadd.f32 %v242, %v310
    %v312 = vpop.f32.mrb[0].mxu0
    %313 = vdwg.mxu0
    %vm314 = vcmask 31744
    %315 = vst.msk [vmem:[%s7] sm:$0xff] %vm314, %v311
    %v316 = vtanh.pop %v311
    %v317 = vmul.f32 %v316, 2.0
    %318 = vst.msk [vmem:[%s8] sm:$0xff] %vm314, %v317
    // Predicated region
    $region34: #{tpu_custom_call.1} parent=1 // pred_check
      _
    $region35: #{tpu_custom_call.1} parent=1 // pred_check_branch
      %320 = sbr.rel (0) target = $region37
    $region36: #{tpu_custom_call.1} parent=1 // pred_region
      _
    $region37: #{tpu_custom_call.1} parent=1 // pred_fallthru
      _
    // Predicated region
    $region38: #{tpu_custom_call.1} parent=1 // pred_check
      _
    $region39: #{tpu_custom_call.1} parent=1 // pred_check_branch
      %322 = sbr.rel (0) target = $region41
    $region40: #{tpu_custom_call.1} parent=1 // pred_region
      _
    $region41: #{tpu_custom_call.1} parent=1 // pred_fallthru
      _
    // Predicated region
    $region42: #{tpu_custom_call.1} parent=1 // pred_check
      _
    $region43: #{tpu_custom_call.1} parent=1 // pred_check_branch
      %324 = sbr.rel (0) target = $region45
    $region44: #{tpu_custom_call.1} parent=1 // pred_region
      _
    $region45: #{tpu_custom_call.1} parent=1 // pred_fallthru
      _
    // Predicated region
    $region46: #{tpu_custom_call.1} parent=1 // pred_check
      _
    $region47: #{tpu_custom_call.1} parent=1 // pred_check_branch
      %326 = sbr.rel (0) target = $region49
    $region48: #{tpu_custom_call.1} parent=1 // pred_region
      _
    $region49: #{tpu_custom_call.1} parent=1 // pred_fallthru
      _
    %327 = vsyncpa [#allocation3], 1

</llo_original>
